<compile_context>
chip_gen: v7x
topology: tpu7x:2x2x1
jax: 0.10.0
libtpu: 0.0.40
codegen_flags: <defaults>
</compile_context>

<pallas_src>
import functools
import math

import jax
import jax.numpy as jnp
from jax.experimental import pallas as pl
from jax.experimental.pallas import tpu as pltpu


# ----------------------------- small helpers --------------------------------

def _round_up(x: int, m: int) -> int:
    return (x + m - 1) // m * m


def _cdiv(a: int, b: int) -> int:
    return -(-a // b)


def _pick_tile_div(padded_dim: int, cap: int) -> int:
    """Largest multiple of 128 that is <= cap and divides padded_dim.

    padded_dim is itself a multiple of 128, so 128 always works."""
    t = max(128, (min(cap, padded_dim) // 128) * 128)
    while padded_dim % t:
        t -= 128
    return t


def _vmem_budget_bytes() -> int:
    """Chip-aware scoped-VMEM budget, with headroom for compiler scratch."""
    try:
        cap = pltpu.get_tpu_info().vmem_capacity_bytes
    except Exception:
        cap = 64 * 1024 * 1024
    if cap >= 120 * 1024 * 1024:          # v5e / v6e: 128 MiB physical
        return 100 * 1024 * 1024
    return 52 * 1024 * 1024               # v7x: 64 MiB physical -> leave headroom


# ------------------------------- kernel --------------------------------------

def dense_kernel(x_ref, w_ref, b_ref, o_ref, acc_ref, *, activation, compute_dtype):
    """One (tm, tn) output tile, accumulating over the K grid axis (axis 2)."""
    k = pl.program_id(2)

    @pl.when(k == 0)
    def _():
        acc_ref[...] = jnp.zeros_like(acc_ref)

    a = x_ref[...]
    w = w_ref[...]
    if compute_dtype is not None:
        # In-kernel VPU cast of the activation tile (cheap, hidden under MXU);
        # the weight is already stored in the compute dtype at init time.
        if a.dtype != compute_dtype:
            a = a.astype(compute_dtype)
        if w.dtype != compute_dtype:
            w = w.astype(compute_dtype)
    acc_ref[...] += jnp.dot(a, w, preferred_element_type=jnp.float32)

    @pl.when(k == pl.num_programs(2) - 1)
    def _():
        y = acc_ref[...] + b_ref[...]            # (tm, tn) + (1, tn), f32 epilogue
        if activation == "leaky":
            y = jnp.where(y >= 0, y, 0.01 * y)   # torch LeakyReLU default slope
        elif activation == "softmax":
            # Softmax over dim=1 == last axis; the full (padded) N lives in this
            # block. Padded columns carry a -1e30 bias -> exp() == 0.
            m = jnp.max(y, axis=-1, keepdims=True)
            e = jnp.exp(y - m)
            s = jnp.sum(e, axis=-1, keepdims=True)
            y = e / s                            # exact division (parity w/ torch)
        # 'linear' -> identity
        o_ref[...] = y.astype(o_ref.dtype)


# ----------------------------- parameter prep --------------------------------

def prepare_dense_params(weight, bias, activation="linear",
                         compute_dtype=jnp.bfloat16):
    """One-time (init) prep of torch.nn.Linear params.

    weight: (out_channels, in_channels)  -- torch layout
    bias:   (out_channels,)
    Transposes, pads to 128-multiples, and casts the weight to compute_dtype so
    the forward pass never pays a per-call HBM transpose / pad / cast.
    """
    if activation not in ("linear", "leaky", "softmax"):
        raise ValueError(f"unknown activation: {activation}")
    N, K = weight.shape
    assert bias.shape == (N,)
    Kp, Np = _round_up(K, 128), _round_up(N, 128)

    w_t = jnp.transpose(weight)                              # (K, N), once
    if (Kp, Np) != (K, N):
        w_t = jnp.pad(w_t, ((0, Kp - K), (0, Np - N)))       # zero pad, once
    if compute_dtype is not None:
        w_t = w_t.astype(compute_dtype)

    b = bias.astype(jnp.float32)
    if Np != N:
        # Padded output columns must vanish from the softmax row sum.
        pad_val = -1e30 if activation == "softmax" else 0.0
        b = jnp.concatenate([b, jnp.full((Np - N,), pad_val, jnp.float32)])
    b = b.reshape(1, Np)

    return {
        "weight_t": w_t,                 # (Kp, Np), padded, compute dtype
        "bias": b,                       # (1, Np), f32
        "in_channels": K,
        "out_channels": N,
        "activation": activation,
        "compute_dtype": None if compute_dtype is None else jnp.dtype(compute_dtype),
    }


def init_dense_params(key, in_channels, out_channels, activation="linear",
                      compute_dtype=jnp.bfloat16):
    """torch.nn.Linear-style init (U(-1/sqrt(in), 1/sqrt(in)))."""
    kw, kb = jax.random.split(key)
    bound = 1.0 / math.sqrt(in_channels)
    weight = jax.random.uniform(kw, (out_channels, in_channels), jnp.float32,
                                -bound, bound)
    bias = jax.random.uniform(kb, (out_channels,), jnp.float32, -bound, bound)
    return prepare_dense_params(weight, bias, activation, compute_dtype)


# ----------------------------- tile selection ---------------------------------

def _select_tiles(M, Kp, Np, activation, elt_w, granule, budget):
    def fits(tm, tk, tn):
        vmem = (2 * tm * tk * 4          # x tiles (f32 in HBM, double-buffered)
                + 3 * tk * tn * elt_w    # weight tiles (Buffered(3))
                + 2 * tn * 4             # bias tiles
                + 2 * tm * tn * 4        # output tiles (f32, double-buffered)
                + tm * tn * 4)           # f32 accumulator scratch
        return vmem <= budget

    if activation == "softmax":
        tn = Np                          # row reduction needs full N in-block
        tk = _pick_tile_div(Kp, 512)
    else:
        tn = _pick_tile_div(Np, 1024)
        tk = _pick_tile_div(Kp, 512)

    # tm: minimize M-padding waste, cap at 512.
    tm = min(512, _round_up(_cdiv(M, _cdiv(M, 512)), granule))

    # Megacore: make sure at least one "parallel" grid axis has >= 2 blocks.
    if _cdiv(M, tm) == 1 and Np // tn == 1 and M > granule:
        tm = _round_up(_cdiv(M, 2), granule)

    # Shrink until the buffered working set fits the chip's VMEM budget.
    while not fits(tm, tk, tn) and tk > 128:
        tk = _pick_tile_div(Kp, tk - 128)
    while not fits(tm, tk, tn) and activation != "softmax" and tn > 128:
        tn = _pick_tile_div(Np, tn - 128)
    while not fits(tm, tk, tn) and tm > granule:
        tm = max(granule, _round_up(tm // 2, granule))
    # TODO(synk): extremely wide softmax layers (Np*tm still over budget at the
    # minimum tm) would need a streamed online-softmax over N tiles.
    return tm, tk, tn


# -------------------------------- forward -------------------------------------

def dense_forward(params, x):
    """y = activation(x @ W^T + b) with prepared params (see prepare_dense_params)."""
    M, K = x.shape
    if K != params["in_channels"]:
        raise ValueError("in_channels mismatch")
    w = params["weight_t"]
    b = params["bias"]
    Kp, Np = w.shape
    N = params["out_channels"]
    activation = params["activation"]
    compute_dtype = params["compute_dtype"]

    elt_w = jnp.dtype(w.dtype).itemsize
    granule = 16 if (compute_dtype is not None and compute_dtype.itemsize < 4) else 8
    budget = _vmem_budget_bytes()
    tm, tk, tn = _select_tiles(M, Kp, Np, activation, elt_w, granule, budget)

    Mp = _cdiv(M, tm) * tm
    xp = x
    if (Mp, Kp) != (M, K):
        xp = jnp.pad(x, ((0, Mp - M), (0, Kp - K)))   # only x is padded per call

    grid = (Mp // tm, Np // tn, Kp // tk)

    footprint = (2 * tm * tk * 4 + 3 * tk * tn * elt_w + 2 * tn * 4
                 + 2 * tm * tn * 4 + tm * tn * 4)
    vmem_limit = int(min(budget, max(32 * 1024 * 1024, 2 * footprint)))

    kernel = functools.partial(dense_kernel, activation=activation,
                               compute_dtype=compute_dtype)

    def run(weight_buffer_depth):
        if weight_buffer_depth > 2:
            # Depth-3 buffering on the (streamed) weight hides DMA jitter in the
            # weight-bandwidth-bound (skinny-M) regime.
            try:
                w_spec = pl.BlockSpec((tk, tn), lambda i, j, k: (k, j),
                                      pipeline_mode=pl.Buffered(weight_buffer_depth))
            except Exception:
                w_spec = pl.BlockSpec((tk, tn), lambda i, j, k: (k, j))
        else:
            w_spec = pl.BlockSpec((tk, tn), lambda i, j, k: (k, j))

        return pl.pallas_call(
            kernel,
            out_shape=jax.ShapeDtypeStruct((Mp, Np), x.dtype),
            grid_spec=pltpu.PrefetchScalarGridSpec(
                num_scalar_prefetch=0,
                grid=grid,
                in_specs=[
                    pl.BlockSpec((tm, tk), lambda i, j, k: (i, k)),
                    w_spec,
                    pl.BlockSpec((1, tn), lambda i, j, k: (0, j)),
                ],
                out_specs=pl.BlockSpec((tm, tn), lambda i, j, k: (i, j)),
                scratch_shapes=[pltpu.VMEM((tm, tn), jnp.float32)],
            ),
            compiler_params=pltpu.CompilerParams(
                dimension_semantics=("parallel", "parallel", "arbitrary"),
                vmem_limit_bytes=vmem_limit,
            ),
            cost_estimate=pl.CostEstimate(
                flops=2 * M * N * K,
                bytes_accessed=4 * M * K + elt_w * K * N + 4 * (M * N + N),
                transcendentals=M * N if activation == "softmax" else 0,
            ),
        )(xp, w, b)

    try:
        out_padded = run(3)
    except Exception:
        # Fall back to the default double-buffered weight spec.
        out_padded = run(2)

    return out_padded[:M, :N]


# --------------------------------- test ---------------------------------------

if __name__ == "__main__":
    key = jax.random.PRNGKey(0)

    def ref(x, weight, bias, act):
        y = x @ weight.T + bias
        if act == "leaky":
            return jnp.where(y >= 0, y, 0.01 * y)
        if act == "softmax":
            return jax.nn.softmax(y, axis=1)
        return y

    ok = True
    # (batch, in_channels, out_channels): a tiny layer (grid collapses), a layer
    # that exercises M-padding + the 2-block megacore split + a non-512 K tile,
    # and a layer with N padding (520 -> 640).
    shapes = ((8, 32, 128), (300, 384, 200), (48, 256, 520))
    for (batch, cin, cout) in shapes:
        k_x, k_w, k_b, key = jax.random.split(key, 4)
        x = jax.random.normal(k_x, (batch, cin), jnp.float32)
        bound = 1.0 / math.sqrt(cin)
        weight = jax.random.uniform(k_w, (cout, cin), jnp.float32, -bound, bound)
        bias = jax.random.uniform(k_b, (cout,), jnp.float32, -bound, bound)
        for act in ("linear", "leaky", "softmax"):
            expected = ref(x, weight, bias, act)
            # bf16 (default, MXU-peak) path gets a looser tolerance than the
            # full-f32 path; accumulation is f32 in both.
            for cdt, tol in ((jnp.float32, 1e-4), (jnp.bfloat16, 3e-2)):
                params = prepare_dense_params(weight, bias, act, compute_dtype=cdt)
                out = jax.block_until_ready(dense_forward(params, x))
                ok &= out.shape == expected.shape
                ok &= bool(jnp.allclose(out, expected, atol=tol, rtol=tol))

    print("KERNEL_OK" if ok else "KERNEL_MISMATCH")
</pallas_src>

<mosaic_0001>
module attributes {stable_mosaic.version = 11 : i64} {
  func.func @dense_kernel(%arg0: i32, %arg1: i32, %arg2: i32, %arg3: memref<8x128xf32, #tpu.memory_space<vmem>>, %arg4: memref<128x128xf32, #tpu.memory_space<vmem>>, %arg5: memref<1x128xf32, #tpu.memory_space<vmem>>, %arg6: memref<8x128xf32, #tpu.memory_space<vmem>>, %arg7: memref<8x128xf32, #tpu.memory_space<vmem>>) attributes {dimension_semantics = [#tpu.dimension_semantics<parallel>, #tpu.dimension_semantics<parallel>, #tpu.dimension_semantics<arbitrary>], iteration_bounds = array<i64: 1, 1, 1>, scalar_prefetch = 0 : i64, scratch_operands = 1 : i64, tpu.core_type = #tpu.core_type<tc>, window_params = [{transform_indices = @transform_0, window_bounds = array<i64: 8, 128>}, {transform_indices = @transform_1, window_bounds = array<i64: 128, 128>}, {transform_indices = @transform_2, window_bounds = array<i64: 1, 128>}, {transform_indices = @transform_3, window_bounds = array<i64: 8, 128>}]} {
    %c0_i32 = arith.constant 0 : i32
    %0 = arith.cmpi eq, %arg2, %c0_i32 : i32
    %1 = arith.extui %0 : i1 to i32
    %c0_i32_0 = arith.constant 0 : i32
    %2 = arith.cmpi ne, %1, %c0_i32_0 : i32
    scf.if %2 {
      %cst_10 = arith.constant 0.000000e+00 : f32
      %12 = vector.broadcast %cst_10 : f32 to vector<8x128xf32>
      %c0_11 = arith.constant 0 : index
      %c0_12 = arith.constant 0 : index
      %13 = vector.load %arg7[%c0_11, %c0_12] : memref<8x128xf32, #tpu.memory_space<vmem>>, vector<8x128xf32>
      tpu.vector_store %arg7[%c0_11, %c0_12], %12 {strides = array<i32>} : memref<8x128xf32, #tpu.memory_space<vmem>>, vector<8x128xf32>,
    } else {
    }
    %c0 = arith.constant 0 : index
    %c0_1 = arith.constant 0 : index
    %3 = vector.load %arg3[%c0, %c0_1] : memref<8x128xf32, #tpu.memory_space<vmem>>, vector<8x128xf32>
    %c0_2 = arith.constant 0 : index
    %c0_3 = arith.constant 0 : index
    %4 = vector.load %arg4[%c0_2, %c0_3] : memref<128x128xf32, #tpu.memory_space<vmem>>, vector<128x128xf32>
    %c0_4 = arith.constant 0 : index
    %c0_5 = arith.constant 0 : index
    %5 = vector.load %arg7[%c0_4, %c0_5] : memref<8x128xf32, #tpu.memory_space<vmem>>, vector<8x128xf32>
    %cst = arith.constant dense<0.000000e+00> : vector<8x128xf32>
    %6 = tpu.matmul %3, %4, %cst {dimension_numbers = #tpu.dot_dimension_numbers<[1], [0], [0], [1], [0, 0, 1, 1], [], []>} : vector<8x128xf32>, vector<128x128xf32>, vector<8x128xf32> -> vector<8x128xf32>
    %7 = arith.addf %5, %6 : vector<8x128xf32>
    %c0_6 = arith.constant 0 : index
    %c0_7 = arith.constant 0 : index
    %8 = vector.load %arg7[%c0_6, %c0_7] : memref<8x128xf32, #tpu.memory_space<vmem>>, vector<8x128xf32>
    tpu.vector_store %arg7[%c0_6, %c0_7], %7 {strides = array<i32>} : memref<8x128xf32, #tpu.memory_space<vmem>>, vector<8x128xf32>,
    %c0_i32_8 = arith.constant 0 : i32
    %9 = arith.cmpi eq, %arg2, %c0_i32_8 : i32
    %10 = arith.extui %9 : i1 to i32
    %c0_i32_9 = arith.constant 0 : i32
    %11 = arith.cmpi ne, %10, %c0_i32_9 : i32
    scf.if %11 {
      %c0_10 = arith.constant 0 : index
      %c0_11 = arith.constant 0 : index
      %12 = vector.load %arg7[%c0_10, %c0_11] : memref<8x128xf32, #tpu.memory_space<vmem>>, vector<8x128xf32>
      %c0_12 = arith.constant 0 : index
      %c0_13 = arith.constant 0 : index
      %13 = vector.load %arg5[%c0_12, %c0_13] : memref<1x128xf32, #tpu.memory_space<vmem>>, vector<1x128xf32>
      %14 = vector.broadcast %13 : vector<1x128xf32> to vector<8x128xf32>
      %15 = arith.addf %12, %14 : vector<8x128xf32>
      %c0_14 = arith.constant 0 : index
      %c0_15 = arith.constant 0 : index
      %16 = vector.load %arg6[%c0_14, %c0_15] : memref<8x128xf32, #tpu.memory_space<vmem>>, vector<8x128xf32>
      tpu.vector_store %arg6[%c0_14, %c0_15], %15 {strides = array<i32>} : memref<8x128xf32, #tpu.memory_space<vmem>>, vector<8x128xf32>,
    } else {
    }
    return
  }
  func.func @transform_0(%arg0: i32, %arg1: i32, %arg2: i32) -> (i32, i32) {
    %c0_i32 = arith.constant 0 : i32
    return %arg0, %arg2 : i32, i32
  }
  func.func @transform_1(%arg0: i32, %arg1: i32, %arg2: i32) -> (i32, i32) {
    %c0_i32 = arith.constant 0 : i32
    return %arg2, %arg1 : i32, i32
  }
  func.func @transform_2(%arg0: i32, %arg1: i32, %arg2: i32) -> (i32, i32) {
    %c0_i32 = arith.constant 0 : i32
    %c0_i32_0 = arith.constant 0 : i32
    return %c0_i32, %arg1 : i32, i32
  }
  func.func @transform_3(%arg0: i32, %arg1: i32, %arg2: i32) -> (i32, i32) {
    %c0_i32 = arith.constant 0 : i32
    return %arg0, %arg1 : i32, i32
  }
}

</mosaic_0001>

<llo_original>
// kernel: tpu_custom_call.1
$region0: #{tpu_custom_call.1}
  #allocation0 [shape = 'u32[]', space=smem, size = 0x4, offset = 0x4, fixed_abs, tag = 'smem constant byte address 0x4 - core index']
  #allocation1 [shape = 'u32[144,128]{1,0:T(1,128)}', space=vmem, size = 0x12000, scoped, tag = 'internal scratch']
  #allocation2 [shape = 'f32[8,128]{1,0:T(8,128)}', space=vmem, size = 0x1000, scoped, tag = 'scratch operand']
  %s0 = inlined_call_operand.hbm [shape: f32[8,128], index: 0, kind: input, shape index: {}]
  %s1 = inlined_call_operand.hbm [shape: f32[128,128], index: 1, kind: input, shape index: {}]
  %s2 = inlined_call_operand.vmem [shape: f32[1,128], index: 2, kind: input, shape index: {}]
  %s3 = inlined_call_operand.hbm [shape: f32[8,128], index: 3, kind: output, shape index: {}]
  %s4 = sld [smem:[#allocation0]]
  $region38: #{tpu_custom_call.1} parent=0
    _
  %s6 = ssub.s32 1, %s4
  %s7 = scalar_select 0, %s6, %s4
  $region1: #{tpu_custom_call.1} parent=0
    #allocation3 [shape = 'u8[4096]{0}', space=vmem, size = 0x1000, scoped, tag = 'input window, operand 0, single buffered']
    #allocation4 [shape = 's32[1]{0}', space=sflag, size = 0x4, scoped, tag = 'scoped memory for tpu_custom_call.1']
    #allocation5 [shape = 's32[1]{0}', space=sflag, size = 0x4, scoped, tag = 'scoped memory for tpu_custom_call.1']
    #allocation6 [shape = 'u8[65536]{0}', space=vmem, size = 0x10000, scoped, tag = 'input window, operand 1, single buffered']
    #allocation7 [shape = 's32[1]{0}', space=sflag, size = 0x4, scoped, tag = 'scoped memory for tpu_custom_call.1']
    #allocation8 [shape = 'u8[4096]{0}', space=vmem, size = 0x1000, scoped, tag = 'output window, operand 0, single buffered']
    %8 = vsyncpa [#allocation4], 0
    %9 = vsyncpa [#allocation7], 0
    %10 = vsyncpa [#allocation5], 0
    // Predicated region
    $region2: #{tpu_custom_call.1} parent=1 // pred_check
      _
    $region3: #{tpu_custom_call.1} parent=1 // pred_check_branch
      %12 = sbr.rel (0) target = $region5
    $region4: #{tpu_custom_call.1} parent=1 // pred_region
      %s14 = ssub.s32 128, 128
      %15 = vsyncadd [#allocation4], %s14
      %s17 = sshll.u32 [#allocation3], 4
      %s18 = int_to_ptr.vmem [resolvable:$true] %s17
      %20 = dma.hbm_to_vmem [thread:$0]  %s0, 128, %s18, [#allocation4]
    $region5: #{tpu_custom_call.1} parent=1 // pred_fallthru
      _
    // Predicated region
    $region6: #{tpu_custom_call.1} parent=1 // pred_check
      _
    $region7: #{tpu_custom_call.1} parent=1 // pred_check_branch
      %22 = sbr.rel (0) target = $region9
    $region8: #{tpu_custom_call.1} parent=1 // pred_region
      %s24 = ssub.s32 2048, 2048
      %25 = vsyncadd [#allocation7], %s24
      %s26 = sshll.u32 [#allocation6], 4
      %s27 = int_to_ptr.vmem [resolvable:$true] %s26
      %32 = dma.hbm_to_vmem [thread:$0]  %s1, 2048, %s27, [#allocation7], 128, 128, 8
    $region9: #{tpu_custom_call.1} parent=1 // pred_fallthru
      _
    // Predicated region
    $region10: #{tpu_custom_call.1} parent=1 // pred_check
      _
    $region11: #{tpu_custom_call.1} parent=1 // pred_check_branch
      %34 = sbr.rel (0) target = $region13
    $region12: #{tpu_custom_call.1} parent=1 // pred_region
      _
    $region13: #{tpu_custom_call.1} parent=1 // pred_fallthru
      _
    // Predicated region
    $region14: #{tpu_custom_call.1} parent=1 // pred_check
      _
    $region15: #{tpu_custom_call.1} parent=1 // pred_check_branch
      %36 = sbr.rel (0) target = $region17
    $region16: #{tpu_custom_call.1} parent=1 // pred_region
      %37 = dma.done [#allocation4], 128
    $region17: #{tpu_custom_call.1} parent=1 // pred_fallthru
      _
    // Predicated region
    $region18: #{tpu_custom_call.1} parent=1 // pred_check
      _
    $region19: #{tpu_custom_call.1} parent=1 // pred_check_branch
      %39 = sbr.rel (0) target = $region21
    $region20: #{tpu_custom_call.1} parent=1 // pred_region
      %40 = dma.done [#allocation7], 2048
    $region21: #{tpu_custom_call.1} parent=1 // pred_fallthru
      _
    %p41 = scmp.eq.s32.totalorder 0, 0
    // Predicated region
    $region22: #{tpu_custom_call.1} parent=1 // pred_check
      %p42 = pneg %p41
    $region23: #{tpu_custom_call.1} parent=1 // pred_check_branch
      %44 = sbr.rel (%p42) target = $region25
    $region24: #{tpu_custom_call.1} parent=1 // pred_region
      %45 = vst [vmem:[#allocation2] sm:$0xff] 0.0
    $region25: #{tpu_custom_call.1} parent=1 // pred_fallthru
      _
    %v46 = vld [vmem:[#allocation3] sm:$0xff]
    %v47 = vld [vmem:[#allocation6] sm:$0xff]
    %v48 = vld [vmem:[#allocation6 + $0x8] sm:$0xff]
    %v49 = vld [vmem:[#allocation6 + $0x10] sm:$0xff]
    %v50 = vld [vmem:[#allocation6 + $0x18] sm:$0xff]
    %v51 = vld [vmem:[#allocation6 + $0x20] sm:$0xff]
    %v52 = vld [vmem:[#allocation6 + $0x28] sm:$0xff]
    %v53 = vld [vmem:[#allocation6 + $0x30] sm:$0xff]
    %v54 = vld [vmem:[#allocation6 + $0x38] sm:$0xff]
    %v55 = vld [vmem:[#allocation6 + $0x40] sm:$0xff]
    %v56 = vld [vmem:[#allocation6 + $0x48] sm:$0xff]
    %v57 = vld [vmem:[#allocation6 + $0x50] sm:$0xff]
    %v58 = vld [vmem:[#allocation6 + $0x58] sm:$0xff]
    %v59 = vld [vmem:[#allocation6 + $0x60] sm:$0xff]
    %v60 = vld [vmem:[#allocation6 + $0x68] sm:$0xff]
    %v61 = vld [vmem:[#allocation6 + $0x70] sm:$0xff]
    %v62 = vld [vmem:[#allocation6 + $0x78] sm:$0xff]
    %v63 = vld [vmem:[#allocation2] sm:$0xff]
    %64 = vmatprep.subr.mxu0 0.0
    %65 = vmatpush1.msra.mxu0 %v47
    %66 = vmatprep.subr.mxu0 0.0
    %67 = vmatpush1.msra.mxu0 %v48
    %68 = vmatprep.subr.mxu0 0.0
    %69 = vmatpush1.msra.mxu0 %v49
    %70 = vmatprep.subr.mxu0 0.0
    %71 = vmatpush1.msra.mxu0 %v50
    %72 = vmatprep.subr.mxu0 0.0
    %73 = vmatpush1.msra.mxu0 %v51
    %74 = vmatprep.subr.mxu0 0.0
    %75 = vmatpush1.msra.mxu0 %v52
    %76 = vmatprep.subr.mxu0 0.0
    %77 = vmatpush1.msra.mxu0 %v53
    %78 = vmatprep.subr.mxu0 0.0
    %79 = vmatpush1.msra.mxu0 %v54
    %80 = vmatprep.subr.mxu0 0.0
    %81 = vmatpush1.msra.mxu0 %v55
    %82 = vmatprep.subr.mxu0 0.0
    %83 = vmatpush1.msra.mxu0 %v56
    %84 = vmatprep.subr.mxu0 0.0
    %85 = vmatpush1.msra.mxu0 %v57
    %86 = vmatprep.subr.mxu0 0.0
    %87 = vmatpush1.msra.mxu0 %v58
    %88 = vmatprep.subr.mxu0 0.0
    %89 = vmatpush1.msra.mxu0 %v59
    %90 = vmatprep.subr.mxu0 0.0
    %91 = vmatpush1.msra.mxu0 %v60
    %92 = vmatprep.subr.mxu0 0.0
    %93 = vmatpush1.msra.mxu0 %v61
    %94 = vmatprep.subr.mxu0 0.0
    %95 = vmatpush1.msra.mxu0 %v62
    %96 = vmatprep.subr.mxu0 0.0
    %97 = vmatpush1.msra.mxu0 0.0
    %98 = vmatprep.subr.mxu0 0.0
    %99 = vmatpush1.msra.mxu0 0.0
    %100 = vmatprep.subr.mxu0 0.0
    %101 = vmatpush1.msra.mxu0 0.0
    %102 = vmatprep.subr.mxu0 0.0
    %103 = vmatpush1.msra.mxu0 0.0
    %104 = vmatprep.subr.mxu0 0.0
    %105 = vmatpush1.msra.mxu0 0.0
    %106 = vmatprep.subr.mxu0 0.0
    %107 = vmatpush1.msra.mxu0 0.0
    %108 = vmatprep.subr.mxu0 0.0
    %109 = vmatpush1.msra.mxu0 0.0
    %110 = vmatprep.subr.mxu0 0.0
    %111 = vmatpush1.msra.mxu0 0.0
    %112 = vmatprep.subr.mxu0 0.0
    %113 = vmatpush1.msra.mxu0 0.0
    %114 = vmatprep.subr.mxu0 0.0
    %115 = vmatpush1.msra.mxu0 0.0
    %116 = vmatprep.subr.mxu0 0.0
    %117 = vmatpush1.msra.mxu0 0.0
    %118 = vmatprep.subr.mxu0 0.0
    %119 = vmatpush1.msra.mxu0 0.0
    %120 = vmatprep.subr.mxu0 0.0
    %121 = vmatpush1.msra.mxu0 0.0
    %122 = vmatprep.subr.mxu0 0.0
    %123 = vmatpush1.msra.mxu0 0.0
    %124 = vmatprep.subr.mxu0 0.0
    %125 = vmatpush1.msra.mxu0 0.0
    %126 = vmatprep.subr.mxu0 0.0
    %127 = vmatpush1.msra.mxu0 0.0
    %128 = vmatprep.mubr.f32.mxu0 0.0
    %129 = vmatmul.mubr.f32.gmra.mrb[0].mxu0 %v46
    %v130 = vpop.f32.mrb[0].mxu0
    %v131 = vadd.f32 0.0, %v130
    %v132 = vpop.f32.mrb[0].mxu0
    %133 = vdwg.mxu0
    %v134 = vadd.f32 %v63, %v131
    %135 = vst [vmem:[#allocation2] sm:$0xff] %v134
    // Predicated region
    $region26: #{tpu_custom_call.1} parent=1 // pred_check
      %p136 = pneg %p41
    $region27: #{tpu_custom_call.1} parent=1 // pred_check_branch
      %138 = sbr.rel (%p136) target = $region29
    $region28: #{tpu_custom_call.1} parent=1 // pred_region
      %v139 = vld [vmem:[#allocation2] sm:$0xff]
      %v140 = vld [vmem:[%s2] sm:$0x1]
      %v142 = vlaneseq
      %v143 = vshrl.u32 %v142, 7
      %v144 = vsub.s32 0, %v143
      %v145 = vrot.slane %v140, %v144
      %v147 = vadd.f32 %v139, %v145
      %148 = vst [vmem:[#allocation8] sm:$0xff] %v147
    $region29: #{tpu_custom_call.1} parent=1 // pred_fallthru
      _
    // Predicated region
    $region30: #{tpu_custom_call.1} parent=1 // pred_check
      _
    $region31: #{tpu_custom_call.1} parent=1 // pred_check_branch
      %150 = sbr.rel (0) target = $region33
    $region32: #{tpu_custom_call.1} parent=1 // pred_region
      %s152 = ssub.s32 128, 128
      %153 = vsyncadd [#allocation5], %s152
      %s155 = sshll.u32 [#allocation8], 4
      %s156 = int_to_ptr.vmem [resolvable:$true] %s155
      %158 = dma.vmem_to_hbm [thread:$0]  %s156, 128, %s3, [#allocation5]
    $region33: #{tpu_custom_call.1} parent=1 // pred_fallthru
      _
    // Predicated region
    $region34: #{tpu_custom_call.1} parent=1 // pred_check
      _
    $region35: #{tpu_custom_call.1} parent=1 // pred_check_branch
      %160 = sbr.rel (0) target = $region37
    $region36: #{tpu_custom_call.1} parent=1 // pred_region
      %161 = dma.done [#allocation5], 128
    $region37: #{tpu_custom_call.1} parent=1 // pred_fallthru
      _
    %162 = vsyncpa [#allocation4], 1
    %163 = vsyncpa [#allocation7], 1
    %164 = vsyncpa [#allocation5], 1

</llo_original>
